<compile_context>
chip_gen: v6e
topology: v6e:2x2x1
jax: 0.10.0
libtpu: 0.0.40
codegen_flags: <defaults>
</compile_context>

<pallas_src>
import functools

import jax
import jax.numpy as jnp
from jax.experimental import pallas as pl
from jax.experimental.pallas import tpu as pltpu  # noqa: F401  (CompilerParams/core_map when scaling past toy shapes)


# ----------------------------- Pallas kernel ------------------------------- #

def moe_experts_kernel(x_ref, w1_ref, b1_ref, wexp_ref, w2_ref, wfull_ref, b2_ref, out_ref):
    """Single grid-less invocation, everything resident in VMEM.

    x_ref     [N, d]      bf16  tokens
    w1_ref    [d, E*ed]   bf16  concatenated expert first-layer weights
    b1_ref    [1, E*ed]   f32   concatenated expert first-layer biases
    wexp_ref  [N, E*ed]   f32   routing weights broadcast over ed (matches h layout)
    w2_ref    [E*ed, dp]  bf16  concatenated expert second-layer weights (lane-padded)
    wfull_ref [N, E]      f32   per-token/per-expert combine weight (for the b2 term)
    b2_ref    [E, dp]     f32   expert second-layer biases (lane-padded)
    out_ref   [N, dp]     f32   mixture output (lane-dense; caller slices [:, :d])
    """
    # One wide MXU matmul over ALL experts: [N, d] @ [d, E*ed].
    h = jnp.dot(x_ref[...], w1_ref[...], preferred_element_type=jnp.float32) + b1_ref[...]
    h = jnp.maximum(h, 0.0)                                     # ReLU, f32 on the VPU
    # Fold routing weights in f32 on the VPU; cast to bf16 only right before the MXU.
    hw = (h * wexp_ref[...]).astype(jnp.bfloat16)
    # Cross-expert reduction rides the MXU K-dim: [N, E*ed] @ [E*ed, dp].
    acc = jnp.dot(hw, w2_ref[...], preferred_element_type=jnp.float32)
    # Routed second-layer bias: tiny exact-f32 matmul [N, E] @ [E, dp].
    acc = acc + jnp.dot(wfull_ref[...], b2_ref[...], preferred_element_type=jnp.float32)
    out_ref[...] = acc


# ------------------------- one-time weight preparation ---------------------- #

def prepare_params(params):
    """Concatenate experts, pre-cast weights to bf16, lane-pad output-dim tensors."""
    W1, b1, W2, b2 = params["W1"], params["b1"], params["W2"], params["b2"]
    E, d, ed = W1.shape
    dp = ((d + 127) // 128) * 128                    # lane-dense output width
    w1cat = jnp.transpose(W1, (1, 0, 2)).reshape(d, E * ed).astype(jnp.bfloat16)
    b1cat = b1.reshape(1, E * ed).astype(jnp.float32)
    w2cat = jnp.zeros((E * ed, dp), jnp.float32).at[:, :d].set(W2.reshape(E * ed, d))
    b2pad = jnp.zeros((E, dp), jnp.float32).at[:, :d].set(b2)
    return {
        "wr_t": params["wr_t"].astype(jnp.float32),  # router stays f32 -> exact top-k
        "w1cat": w1cat,
        "b1cat": b1cat,
        "w2cat": w2cat.astype(jnp.bfloat16),
        "b2pad": b2pad,
    }


# ------------------------------ Python wrapper ----------------------------- #

@functools.partial(jax.jit, static_argnames=("top_k",))
def simple_moe_forward(x, prep, *, top_k=2):
    """x: [b, t, d] float32. prep: output of prepare_params()."""
    b, t, d = x.shape
    E = prep["b2pad"].shape[0]
    Eed = prep["w1cat"].shape[1]
    ed = Eed // E
    dp = prep["w2cat"].shape[1]
    N = b * t
    x_flat = x.reshape(N, d)

    # --- router scores + top-k + (seq-dim!) softmax + combine weights (XLA glue, one jit) ---
    scores = jnp.einsum("nd,de->ne", x_flat, prep["wr_t"]).reshape(b, t, E)   # f32, exact top-k
    topk_vals, topk_idx = jax.lax.top_k(scores, top_k)                        # [b, t, k]
    # PyTorch reference applies softmax over dim=-1 of topk_vals[..., i], i.e. the SEQ axis.
    w_slot = jax.nn.softmax(topk_vals, axis=1).reshape(N, top_k)              # [N, k]
    idx = topk_idx.reshape(N, top_k)                                          # [N, k]
    # Scatter-add combine weights (no [b,t,k,E] one-hot materialized).
    w_full = jnp.zeros((N, E), jnp.float32).at[jnp.arange(N)[:, None], idx].add(w_slot)
    w_exp = jnp.repeat(w_full, ed, axis=1)                                    # [N, E*ed]

    flops = 2 * N * d * Eed + 2 * N * Eed * dp + 2 * N * E * dp
    bytes_accessed = (N * d * 2 + d * Eed * 2 + Eed * 4 + N * Eed * 4
                      + Eed * dp * 2 + N * E * 4 + E * dp * 4 + N * dp * 4)

    # --- expert MLPs + weighted combine: single grid-less Pallas call, all-resident ---
    out_pad = pl.pallas_call(
        moe_experts_kernel,
        out_shape=jax.ShapeDtypeStruct((N, dp), jnp.float32),
        cost_estimate=pl.CostEstimate(flops=flops, transcendentals=0,
                                      bytes_accessed=bytes_accessed),
    )(
        x_flat.astype(jnp.bfloat16),
        prep["w1cat"], prep["b1cat"], w_exp, prep["w2cat"], w_full, prep["b2pad"],
    )

    # TODO(synk): at production shapes add a token-parallel leading grid axis
    # (dimension_semantics=("parallel", ...)) or core_map over v7x's 2 TensorCores,
    # and re-budget the resident expert-weight set against 64 MiB VMEM (v7x) with an
    # explicit vmem_limit_bytes; at N=16/d=32 a single resident invocation is fastest.
    return out_pad[:, :d].reshape(b, t, d)


# --------------------------- pure-JAX reference ---------------------------- #

def simple_moe_ref(x, params, top_k=2):
    b, t, d = x.shape
    wr_t, W1, b1, W2, b2 = (params["wr_t"], params["W1"], params["b1"],
                            params["W2"], params["b2"])
    E = W1.shape[0]
    scores = jnp.einsum("btd,de->bte", x, wr_t)
    topk_vals, topk_idx = jax.lax.top_k(scores, top_k)
    w_slot = jax.nn.softmax(topk_vals, axis=1)
    onehot = jax.nn.one_hot(topk_idx, E, dtype=jnp.float32)
    w_full = jnp.einsum("btk,btke->bte", w_slot, onehot)                 # [b, t, E]
    h = jax.nn.relu(jnp.einsum("btd,edh->beth", x, W1) + b1[None, :, None, :])
    y = jnp.einsum("beth,ehd->betd", h, W2) + b2[None, :, None, :]       # [b, E, t, d]
    return jnp.einsum("bte,betd->btd", w_full, y)


# --------------------------------- main ------------------------------------ #

if __name__ == "__main__":
    batch, seq, hidden = 2, 8, 32
    expert_dim, num_experts, top_k = 64, 4, 2

    key = jax.random.PRNGKey(0)
    k_x, k_wr, k_w1, k_b1, k_w2, k_b2 = jax.random.split(key, 6)

    x = jax.random.normal(k_x, (batch, seq, hidden), dtype=jnp.float32)

    params = {
        # nn.Linear(hidden, num_experts, bias=False).weight is [E, d]; we store its transpose.
        "wr_t": 0.05 * jax.random.normal(k_wr, (hidden, num_experts), jnp.float32),
        # expert i: Linear(d, ed) (+bias), ReLU, Linear(ed, d) (+bias); stored transposed.
        "W1": 0.05 * jax.random.normal(k_w1, (num_experts, hidden, expert_dim), jnp.float32),
        "b1": 0.01 * jax.random.normal(k_b1, (num_experts, expert_dim), jnp.float32),
        "W2": 0.05 * jax.random.normal(k_w2, (num_experts, expert_dim, hidden), jnp.float32),
        "b2": 0.01 * jax.random.normal(k_b2, (num_experts, hidden), jnp.float32),
    }

    prep = prepare_params(params)                    # one-time: concat / bf16 / pad
    prep = jax.tree_util.tree_map(jax.block_until_ready, prep)

    out = simple_moe_forward(x, prep, top_k=top_k)
    out = jax.block_until_ready(out)

    ref = jax.block_until_ready(simple_moe_ref(x, params, top_k=top_k))
    assert out.shape == (batch, seq, hidden)
    # Expert matmuls run in bf16 with f32 accumulation; router/top-k/softmax are exact f32.
    assert jnp.allclose(out, ref, atol=2e-2, rtol=2e-2), "Pallas MoE mismatch vs JAX reference"

    print("KERNEL_OK")
</pallas_src>

<mosaic_0001>
module attributes {stable_mosaic.version = 11 : i64} {
  func.func private @main(%arg0: i32) attributes {dimension_semantics = [#tpu.dimension_semantics<core_parallel>], iteration_bounds = array<i64: 2>, tpu.core_type = #tpu.core_type<sc_scalar_subcore>, window_params = []} {
    return
  }
}

module attributes {stable_mosaic.version = 11 : i64} {
  func.func private @main(%arg0: i32) attributes {dimension_semantics = [#tpu.dimension_semantics<core_parallel>], iteration_bounds = array<i64: 2>, tpu.core_type = #tpu.core_type<sc_scalar_subcore>, window_params = []} {
    return
  }
}

module attributes {stable_mosaic.version = 11 : i64} {
  func.func @moe_experts_kernel(%arg0: memref<16x32xbf16, #tpu.memory_space<vmem>>, %arg1: memref<32x256xbf16, #tpu.memory_space<vmem>>, %arg2: memref<1x256xf32, #tpu.memory_space<vmem>>, %arg3: memref<16x256xf32, #tpu.memory_space<vmem>>, %arg4: memref<256x128xbf16, #tpu.memory_space<vmem>>, %arg5: memref<16x4xf32, #tpu.memory_space<vmem>>, %arg6: memref<4x128xf32, #tpu.memory_space<vmem>>, %arg7: memref<16x128xf32, #tpu.memory_space<vmem>>) attributes {dimension_semantics = [], scalar_prefetch = 0 : i64, scratch_operands = 0 : i64, tpu.core_type = #tpu.core_type<tc>} {
    %c0 = arith.constant 0 : index
    %c0_0 = arith.constant 0 : index
    %0 = vector.load %arg0[%c0, %c0_0] : memref<16x32xbf16, #tpu.memory_space<vmem>>, vector<16x32xbf16>
    %c0_1 = arith.constant 0 : index
    %c0_2 = arith.constant 0 : index
    %1 = vector.load %arg1[%c0_1, %c0_2] : memref<32x256xbf16, #tpu.memory_space<vmem>>, vector<32x256xbf16>
    %cst = arith.constant dense<0.000000e+00> : vector<16x256xf32>
    %2 = tpu.matmul %0, %1, %cst {dimension_numbers = #tpu.dot_dimension_numbers<[1], [0], [0], [1], [0, 0, 1, 1], [], []>} : vector<16x32xbf16>, vector<32x256xbf16>, vector<16x256xf32> -> vector<16x256xf32>
    %c0_3 = arith.constant 0 : index
    %c0_4 = arith.constant 0 : index
    %3 = vector.load %arg2[%c0_3, %c0_4] : memref<1x256xf32, #tpu.memory_space<vmem>>, vector<1x256xf32>
    %4 = vector.broadcast %3 : vector<1x256xf32> to vector<16x256xf32>
    %5 = arith.addf %2, %4 : vector<16x256xf32>
    %cst_5 = arith.constant 0.000000e+00 : f32
    %6 = vector.broadcast %cst_5 : f32 to vector<16x256xf32>
    %7 = arith.maximumf %5, %6 : vector<16x256xf32>
    %c0_6 = arith.constant 0 : index
    %c0_7 = arith.constant 0 : index
    %8 = vector.load %arg3[%c0_6, %c0_7] : memref<16x256xf32, #tpu.memory_space<vmem>>, vector<16x256xf32>
    %9 = arith.mulf %7, %8 : vector<16x256xf32>
    %10 = arith.truncf %9 : vector<16x256xf32> to vector<16x256xbf16>
    %c0_8 = arith.constant 0 : index
    %c0_9 = arith.constant 0 : index
    %11 = vector.load %arg4[%c0_8, %c0_9] : memref<256x128xbf16, #tpu.memory_space<vmem>>, vector<256x128xbf16>
    %cst_10 = arith.constant dense<0.000000e+00> : vector<16x128xf32>
    %12 = tpu.matmul %10, %11, %cst_10 {dimension_numbers = #tpu.dot_dimension_numbers<[1], [0], [0], [1], [0, 0, 1, 1], [], []>} : vector<16x256xbf16>, vector<256x128xbf16>, vector<16x128xf32> -> vector<16x128xf32>
    %c0_11 = arith.constant 0 : index
    %c0_12 = arith.constant 0 : index
    %13 = vector.load %arg5[%c0_11, %c0_12] : memref<16x4xf32, #tpu.memory_space<vmem>>, vector<16x4xf32>
    %c0_13 = arith.constant 0 : index
    %c0_14 = arith.constant 0 : index
    %14 = vector.load %arg6[%c0_13, %c0_14] : memref<4x128xf32, #tpu.memory_space<vmem>>, vector<4x128xf32>
    %cst_15 = arith.constant dense<0.000000e+00> : vector<16x128xf32>
    %15 = tpu.matmul %13, %14, %cst_15 {dimension_numbers = #tpu.dot_dimension_numbers<[1], [0], [0], [1], [0, 0, 1, 1], [], []>} : vector<16x4xf32>, vector<4x128xf32>, vector<16x128xf32> -> vector<16x128xf32>
    %16 = arith.addf %12, %15 : vector<16x128xf32>
    %c0_16 = arith.constant 0 : index
    %c0_17 = arith.constant 0 : index
    %17 = vector.load %arg7[%c0_16, %c0_17] : memref<16x128xf32, #tpu.memory_space<vmem>>, vector<16x128xf32>
    tpu.vector_store %arg7[%c0_16, %c0_17], %16 {strides = array<i32>} : memref<16x128xf32, #tpu.memory_space<vmem>>, vector<16x128xf32>,
    return
  }
}

</mosaic_0001>

<llo_original>
// kernel: simple_moe_forward.1
$region0: #{simple_moe_forward.1}
  #allocation0 [shape = 'u32[]', space=smem, size = 0x4, offset = 0x4, fixed_abs, tag = 'smem constant byte address 0x4 - core index']
  #allocation1 [shape = 'u32[144,128]{1,0:T(1,128)}', space=vmem, size = 0x12000, scoped, tag = 'internal scratch']
  %s0 = inlined_call_operand.vmem [shape: bf16[16,32], index: 0, kind: input, shape index: {}]
  %s1 = inlined_call_operand.vmem [shape: bf16[32,256], index: 1, kind: input, shape index: {}]
  %s2 = inlined_call_operand.vmem [shape: f32[1,256], index: 2, kind: input, shape index: {}]
  %s3 = inlined_call_operand.vmem [shape: f32[16,256], index: 3, kind: input, shape index: {}]
  %s4 = inlined_call_operand.vmem [shape: bf16[256,128], index: 4, kind: input, shape index: {}]
  %s5 = inlined_call_operand.vmem [shape: f32[16,4], index: 5, kind: input, shape index: {}]
  %s6 = inlined_call_operand.vmem [shape: f32[4,128], index: 6, kind: input, shape index: {}]
  %s7 = inlined_call_operand.vmem [shape: f32[16,128], index: 7, kind: output, shape index: {}]
  %s8 = sld [smem:[#allocation0]]
  $region38: #{simple_moe_forward.1} parent=0
    _
  %s10 = ssub.s32 1, %s8
  %s11 = scalar_select 0, %s10, %s8
  // Predicated region
  $region2: #{simple_moe_forward.1} parent=0 // pred_check
    _
  $region3: #{simple_moe_forward.1} parent=0 // pred_check_branch
    %13 = sbr.rel (0) target = $region5
  $region4: #{simple_moe_forward.1} parent=0 // pred_region
    _
  $region5: #{simple_moe_forward.1} parent=0 // pred_fallthru
    _
  // Predicated region
  $region6: #{simple_moe_forward.1} parent=0 // pred_check
    _
  $region7: #{simple_moe_forward.1} parent=0 // pred_check_branch
    %15 = sbr.rel (0) target = $region9
  $region8: #{simple_moe_forward.1} parent=0 // pred_region
    _
  $region9: #{simple_moe_forward.1} parent=0 // pred_fallthru
    _
  // Predicated region
  $region10: #{simple_moe_forward.1} parent=0 // pred_check
    _
  $region11: #{simple_moe_forward.1} parent=0 // pred_check_branch
    %17 = sbr.rel (0) target = $region13
  $region12: #{simple_moe_forward.1} parent=0 // pred_region
    _
  $region13: #{simple_moe_forward.1} parent=0 // pred_fallthru
    _
  // Predicated region
  $region14: #{simple_moe_forward.1} parent=0 // pred_check
    _
  $region15: #{simple_moe_forward.1} parent=0 // pred_check_branch
    %19 = sbr.rel (0) target = $region17
  $region16: #{simple_moe_forward.1} parent=0 // pred_region
    _
  $region17: #{simple_moe_forward.1} parent=0 // pred_fallthru
    _
  // Predicated region
  $region18: #{simple_moe_forward.1} parent=0 // pred_check
    _
  $region19: #{simple_moe_forward.1} parent=0 // pred_check_branch
    %21 = sbr.rel (0) target = $region21
  $region20: #{simple_moe_forward.1} parent=0 // pred_region
    _
  $region21: #{simple_moe_forward.1} parent=0 // pred_fallthru
    _
  // Predicated region
  $region22: #{simple_moe_forward.1} parent=0 // pred_check
    _
  $region23: #{simple_moe_forward.1} parent=0 // pred_check_branch
    %23 = sbr.rel (0) target = $region25
  $region24: #{simple_moe_forward.1} parent=0 // pred_region
    _
  $region25: #{simple_moe_forward.1} parent=0 // pred_fallthru
    _
  // Predicated region
  $region26: #{simple_moe_forward.1} parent=0 // pred_check
    _
  $region27: #{simple_moe_forward.1} parent=0 // pred_check_branch
    %25 = sbr.rel (0) target = $region29
  $region28: #{simple_moe_forward.1} parent=0 // pred_region
    _
  $region29: #{simple_moe_forward.1} parent=0 // pred_fallthru
    _
  %v27 = vld [vmem:[%s0] sm:$0xf]
  %v28 = vld [vmem:[%s0 + $0x4] sm:$0xf]
  %v29 = vld [vmem:[%s1] sm:$0xff]
  %v30 = vld [vmem:[%s1 + $0x8] sm:$0xff]
  %v31 = vld [vmem:[%s1 + $0x10] sm:$0xff]
  %v32 = vld [vmem:[%s1 + $0x18] sm:$0xff]
  %v33 = vld [vmem:[%s2] sm:$0x3]
  %v35 = vlaneseq
  %v36 = vshrl.u32 %v35, 7
  %v37 = vsub.s32 0, %v36
  %v38 = vrot.slane %v33, %v37
  %v39 = vlaneseq
  %v40 = vshrl.u32 %v39, 7
  %v41 = vsub.s32 1, %v40
  %v42 = vrot.slane %v33, %v41
  %v47 = vunpack.c.l.b16 %v27
  %v48 = vunpack.c.l.b16 %v28
  %v49 = vpack.c.b16 %v48, %v47
  %v54 = vunpack.c.l.b16 %v29
  %v55 = vunpack.c.h.b16 %v29
  %v56 = vunpack.c.l.b16 %v30
  %v57 = vunpack.c.h.b16 %v30
  %v58 = vunpack.c.l.b16 %v31
  %v59 = vunpack.c.h.b16 %v31
  %v60 = vunpack.c.l.b16 %v32
  %v61 = vunpack.c.h.b16 %v32
  %v62 = vpack.c.b16 %v56, %v54
  %v63 = vpack.c.b16 %v57, %v55
  %v64 = vpack.c.b16 %v60, %v58
  %v65 = vpack.c.b16 %v61, %v59
  %vm70 = vcmask 261120
  %v72 = vsel %vm70, %v49, 0
  %74 = vmatprep.subr.bf16.mxu0 0
  %75 = vmatpush1.bf16.msra.mxu0 0
  %76 = vmatprep.subr.bf16.mxu0 0
  %77 = vmatpush1.bf16.msra.mxu0 0
  %78 = vmatprep.subr.bf16.mxu0 0
  %79 = vmatpush1.bf16.msra.mxu0 0
  %80 = vmatprep.subr.bf16.mxu0 0
  %81 = vmatpush1.bf16.msra.mxu0 0
  %82 = vmatprep.subr.bf16.mxu0 0
  %83 = vmatpush1.bf16.msra.mxu0 0
  %84 = vmatprep.subr.bf16.mxu0 0
  %85 = vmatpush1.bf16.msra.mxu0 0
  %86 = vmatprep.subr.bf16.mxu0 %v65
  %87 = vmatpush1.bf16.msra.mxu0 %v64
  %88 = vmatprep.subr.bf16.mxu0 %v63
  %89 = vmatpush1.bf16.msra.mxu0 %v62
  %90 = vmatprep.subr.bf16.mxu0 0
  %91 = vmatpush2.bf16.msra.mxu0 0
  %92 = vmatprep.subr.bf16.mxu0 0
  %93 = vmatpush2.bf16.msra.mxu0 0
  %94 = vmatprep.subr.bf16.mxu0 0
  %95 = vmatpush2.bf16.msra.mxu0 0
  %96 = vmatprep.subr.bf16.mxu0 0
  %97 = vmatpush2.bf16.msra.mxu0 0
  %98 = vmatprep.subr.bf16.mxu0 0
  %99 = vmatpush2.bf16.msra.mxu0 0
  %100 = vmatprep.subr.bf16.mxu0 0
  %101 = vmatpush2.bf16.msra.mxu0 0
  %102 = vmatprep.subr.bf16.mxu0 0
  %103 = vmatpush2.bf16.msra.mxu0 0
  %104 = vmatprep.subr.bf16.mxu0 0
  %105 = vmatpush2.bf16.msra.mxu0 0
  %106 = vmatprep.mubr.bf16.mxu0 0
  %107 = vmatmul.mubr.bf16.gmra.mxu0 %v72
  %v108 = vpop.f32.mrf.mxu0
  %v109 = vadd.f32 %v38, %v108
  %v110 = vpop.f32.mrf.mxu0
  %v111 = vadd.f32 %v42, %v110
  %v112 = vpop.f32.mrf.mxu0
  %v113 = vadd.f32 %v38, %v112
  %v114 = vpop.f32.mrf.mxu0
  %v115 = vadd.f32 %v42, %v114
  %116 = vdwg.mxu0
  %v117 = vmax.f32 %v109, 0.0
  %v118 = vmax.f32 %v111, 0.0
  %v119 = vmax.f32 %v113, 0.0
  %v120 = vmax.f32 %v115, 0.0
  %v121 = vld [vmem:[%s3] sm:$0xff]
  %v122 = vld [vmem:[%s3 + $0x8] sm:$0xff]
  %v123 = vld [vmem:[%s3 + $0x10] sm:$0xff]
  %v124 = vld [vmem:[%s3 + $0x18] sm:$0xff]
  %v125 = vmul.f32 %v117, %v121
  %v126 = vmul.f32 %v118, %v122
  %v127 = vmul.f32 %v119, %v123
  %v128 = vmul.f32 %v120, %v124
  %v129 = vpack.c.bf16 %v127, %v125
  %v130 = vpack.c.bf16 %v128, %v126
  %v131 = vld [vmem:[%s4] sm:$0xf]
  %v132 = vld [vmem:[%s4 + $0x4] sm:$0xf]
  %v133 = vld [vmem:[%s4 + $0x8] sm:$0xf]
  %v134 = vld [vmem:[%s4 + $0xc] sm:$0xf]
  %v135 = vld [vmem:[%s4 + $0x10] sm:$0xf]
  %v136 = vld [vmem:[%s4 + $0x14] sm:$0xf]
  %v137 = vld [vmem:[%s4 + $0x18] sm:$0xf]
  %v138 = vld [vmem:[%s4 + $0x1c] sm:$0xf]
  %v139 = vld [vmem:[%s4 + $0x20] sm:$0xf]
  %v140 = vld [vmem:[%s4 + $0x24] sm:$0xf]
  %v141 = vld [vmem:[%s4 + $0x28] sm:$0xf]
  %v142 = vld [vmem:[%s4 + $0x2c] sm:$0xf]
  %v143 = vld [vmem:[%s4 + $0x30] sm:$0xf]
  %v144 = vld [vmem:[%s4 + $0x34] sm:$0xf]
  %v145 = vld [vmem:[%s4 + $0x38] sm:$0xf]
  %v146 = vld [vmem:[%s4 + $0x3c] sm:$0xf]
  %v147 = vld [vmem:[%s4 + $0x40] sm:$0xf]
  %v148 = vld [vmem:[%s4 + $0x44] sm:$0xf]
  %v149 = vld [vmem:[%s4 + $0x48] sm:$0xf]
  %v150 = vld [vmem:[%s4 + $0x4c] sm:$0xf]
  %v151 = vld [vmem:[%s4 + $0x50] sm:$0xf]
  %v152 = vld [vmem:[%s4 + $0x54] sm:$0xf]
  %v153 = vld [vmem:[%s4 + $0x58] sm:$0xf]
  %v154 = vld [vmem:[%s4 + $0x5c] sm:$0xf]
  %v155 = vld [vmem:[%s4 + $0x60] sm:$0xf]
  %v156 = vld [vmem:[%s4 + $0x64] sm:$0xf]
  %v157 = vld [vmem:[%s4 + $0x68] sm:$0xf]
  %v158 = vld [vmem:[%s4 + $0x6c] sm:$0xf]
  %v159 = vld [vmem:[%s4 + $0x70] sm:$0xf]
  %v160 = vld [vmem:[%s4 + $0x74] sm:$0xf]
  %v161 = vld [vmem:[%s4 + $0x78] sm:$0xf]
  %v162 = vld [vmem:[%s4 + $0x7c] sm:$0xf]
  %v163 = vld [vmem:[%s5] sm:$0xff]
  %v164 = vld [vmem:[%s5 + $0x8] sm:$0xff]
  %v165 = vld [vmem:[%s6] sm:$0xf]
  %vm166 = vcmask 31744
  %v168 = vsel %vm166, %v163, 0
  %v171 = vsel %vm166, %v164, 0
  %vm173 = vcmask 1043456
  %v175 = vsel %vm173, %v165, 0
  %177 = vmatprep.subr.mxu0 0.0
  %178 = vmatpush1.msra.mxu0 0.0
  %179 = vmatprep.subr.mxu0 0.0
  %180 = vmatpush1.msra.mxu0 0.0
  %181 = vmatprep.subr.mxu0 0.0
  %182 = vmatpush1.msra.mxu0 0.0
  %183 = vmatprep.subr.mxu0 0.0
  %184 = vmatpush1.msra.mxu0 0.0
  %185 = vmatprep.subr.mxu0 0.0
  %186 = vmatpush1.msra.mxu0 0.0
  %187 = vmatprep.subr.mxu0 0.0
  %188 = vmatpush1.msra.mxu0 0.0
  %189 = vmatprep.subr.mxu0 0.0
  %190 = vmatpush1.msra.mxu0 0.0
  %191 = vmatprep.subr.mxu0 0.0
  %192 = vmatpush1.msra.mxu0 0.0
  %193 = vmatprep.subr.mxu0 0.0
  %194 = vmatpush1.msra.mxu0 0.0
  %195 = vmatprep.subr.mxu0 0.0
  %196 = vmatpush1.msra.mxu0 0.0
  %197 = vmatprep.subr.mxu0 0.0
  %198 = vmatpush1.msra.mxu0 0.0
  %199 = vmatprep.subr.mxu0 0.0
  %200 = vmatpush1.msra.mxu0 0.0
  %201 = vmatprep.subr.mxu0 0.0
  %202 = vmatpush1.msra.mxu0 0.0
  %203 = vmatprep.subr.mxu0 0.0
  %204 = vmatpush1.msra.mxu0 0.0
  %205 = vmatprep.subr.mxu0 0.0
  %206 = vmatpush1.msra.mxu0 0.0
  %207 = vmatprep.subr.mxu0 0.0
  %208 = vmatpush1.msra.mxu0 %v175
  %209 = vmatprep.subr.mxu0 0.0
  %210 = vmatpush2.msra.mxu0 0.0
  %211 = vmatprep.subr.mxu0 0.0
  %212 = vmatpush2.msra.mxu0 0.0
  %213 = vmatprep.subr.mxu0 0.0
  %214 = vmatpush2.msra.mxu0 0.0
  %215 = vmatprep.subr.mxu0 0.0
  %216 = vmatpush2.msra.mxu0 0.0
  %217 = vmatprep.subr.mxu0 0.0
  %218 = vmatpush2.msra.mxu0 0.0
  %219 = vmatprep.subr.mxu0 0.0
  %220 = vmatpush2.msra.mxu0 0.0
  %221 = vmatprep.subr.mxu0 0.0
  %222 = vmatpush2.msra.mxu0 0.0
  %223 = vmatprep.subr.mxu0 0.0
  %224 = vmatpush2.msra.mxu0 0.0
  %225 = vmatprep.subr.mxu0 0.0
  %226 = vmatpush2.msra.mxu0 0.0
  %227 = vmatprep.subr.mxu0 0.0
  %228 = vmatpush2.msra.mxu0 0.0
  %229 = vmatprep.subr.mxu0 0.0
  %230 = vmatpush2.msra.mxu0 0.0
  %231 = vmatprep.subr.mxu0 0.0
  %232 = vmatpush2.msra.mxu0 0.0
  %233 = vmatprep.subr.mxu0 0.0
  %234 = vmatpush2.msra.mxu0 0.0
  %235 = vmatprep.subr.mxu0 0.0
  %236 = vmatpush2.msra.mxu0 0.0
  %237 = vmatprep.subr.mxu0 0.0
  %238 = vmatpush2.msra.mxu0 0.0
  %239 = vmatprep.subr.mxu0 0.0
  %240 = vmatpush2.msra.mxu0 0.0
  %241 = vmatprep.mubr.f32.mxu0 0.0
  %242 = vmatmul.mubr.f32.gmra.mxu0 %v168
  %v243 = vpop.f32.mrf.mxu0
  %v244 = vadd.f32 0.0, %v243
  %v245 = vpop.f32.mrf.mxu0
  %246 = vmatprep.mubr.f32.mxu0 0.0
  %247 = vmatmul.mubr.f32.gmra.mxu0 %v171
  %v248 = vpop.f32.mrf.mxu0
  %v249 = vadd.f32 0.0, %v248
  %v250 = vpop.f32.mrf.mxu0
  %251 = vdwg.mxu0
  %v284 = vunpack.c.l.b16 %v131
  %v285 = vunpack.c.l.b16 %v132
  %v286 = vunpack.c.l.b16 %v133
  %v287 = vunpack.c.l.b16 %v134
  %v288 = vunpack.c.l.b16 %v135
  %v289 = vunpack.c.l.b16 %v136
  %v290 = vunpack.c.l.b16 %v137
  %v291 = vunpack.c.l.b16 %v138
  %v292 = vunpack.c.l.b16 %v139
  %v293 = vunpack.c.l.b16 %v140
  %v294 = vunpack.c.l.b16 %v141
  %v295 = vunpack.c.l.b16 %v142
  %v296 = vunpack.c.l.b16 %v143
  %v297 = vunpack.c.l.b16 %v144
  %v298 = vunpack.c.l.b16 %v145
  %v299 = vunpack.c.l.b16 %v146
  %v300 = vunpack.c.l.b16 %v147
  %v301 = vunpack.c.l.b16 %v148
  %v302 = vunpack.c.l.b16 %v149
  %v303 = vunpack.c.l.b16 %v150
  %v304 = vunpack.c.l.b16 %v151
  %v305 = vunpack.c.l.b16 %v152
  %v306 = vunpack.c.l.b16 %v153
  %v307 = vunpack.c.l.b16 %v154
  %v308 = vunpack.c.l.b16 %v155
  %v309 = vunpack.c.l.b16 %v156
  %v310 = vunpack.c.l.b16 %v157
  %v311 = vunpack.c.l.b16 %v158
  %v312 = vunpack.c.l.b16 %v159
  %v313 = vunpack.c.l.b16 %v160
  %v314 = vunpack.c.l.b16 %v161
  %v315 = vunpack.c.l.b16 %v162
  %v316 = vpack.c.b16 %v285, %v284
  %v317 = vpack.c.b16 %v287, %v286
  %v318 = vpack.c.b16 %v289, %v288
  %v319 = vpack.c.b16 %v291, %v290
  %v320 = vpack.c.b16 %v293, %v292
  %v321 = vpack.c.b16 %v295, %v294
  %v322 = vpack.c.b16 %v297, %v296
  %v323 = vpack.c.b16 %v299, %v298
  %v324 = vpack.c.b16 %v301, %v300
  %v325 = vpack.c.b16 %v303, %v302
  %v326 = vpack.c.b16 %v305, %v304
  %v327 = vpack.c.b16 %v307, %v306
  %v328 = vpack.c.b16 %v309, %v308
  %v329 = vpack.c.b16 %v311, %v310
  %v330 = vpack.c.b16 %v313, %v312
  %v331 = vpack.c.b16 %v315, %v314
  %348 = vmatprep.subr.bf16.mxu0 0
  %349 = vmatpush1.bf16.msra.mxu0 %v323
  %350 = vmatprep.subr.bf16.mxu0 0
  %351 = vmatpush1.bf16.msra.mxu0 %v322
  %352 = vmatprep.subr.bf16.mxu0 0
  %353 = vmatpush1.bf16.msra.mxu0 %v321
  %354 = vmatprep.subr.bf16.mxu0 0
  %355 = vmatpush1.bf16.msra.mxu0 %v320
  %356 = vmatprep.subr.bf16.mxu0 0
  %357 = vmatpush1.bf16.msra.mxu0 %v319
  %358 = vmatprep.subr.bf16.mxu0 0
  %359 = vmatpush1.bf16.msra.mxu0 %v318
  %360 = vmatprep.subr.bf16.mxu0 0
  %361 = vmatpush1.bf16.msra.mxu0 %v317
  %362 = vmatprep.subr.bf16.mxu0 0
  %363 = vmatpush1.bf16.msra.mxu0 %v316
  %364 = vmatprep.subr.bf16.mxu0 0
  %365 = vmatpush2.bf16.msra.mxu0 %v331
  %366 = vmatprep.subr.bf16.mxu0 0
  %367 = vmatpush2.bf16.msra.mxu0 %v330
  %368 = vmatprep.subr.bf16.mxu0 0
  %369 = vmatpush2.bf16.msra.mxu0 %v329
  %370 = vmatprep.subr.bf16.mxu0 0
  %371 = vmatpush2.bf16.msra.mxu0 %v328
  %372 = vmatprep.subr.bf16.mxu0 0
  %373 = vmatpush2.bf16.msra.mxu0 %v327
  %374 = vmatprep.subr.bf16.mxu0 0
  %375 = vmatpush2.bf16.msra.mxu0 %v326
  %376 = vmatprep.subr.bf16.mxu0 0
  %377 = vmatpush2.bf16.msra.mxu0 %v325
  %378 = vmatprep.subr.bf16.mxu0 0
  %379 = vmatpush2.bf16.msra.mxu0 %v324
  %380 = vmatprep.mubr.bf16.mxu0 %v130
  %381 = vmatmul.mubr.bf16.gmra.mxu0 %v129
  %v382 = vpop.f32.mrf.mxu0
  %v383 = vadd.f32 %v244, %v382
  %v384 = vpop.f32.mrf.mxu0
  %v385 = vpop.f32.mrf.mxu0
  %v386 = vadd.f32 %v249, %v385
  %v387 = vpop.f32.mrf.mxu0
  %388 = vdwg.mxu0
  %389 = vst [vmem:[%s7] sm:$0xff] %v383
  %390 = vst [vmem:[%s7 + $0x8] sm:$0xff] %v386
  // Predicated region
  $region30: #{simple_moe_forward.1} parent=0 // pred_check
    _
  $region31: #{simple_moe_forward.1} parent=0 // pred_check_branch
    %392 = sbr.rel (0) target = $region33
  $region32: #{simple_moe_forward.1} parent=0 // pred_region
    _
  $region33: #{simple_moe_forward.1} parent=0 // pred_fallthru
    _
  // Predicated region
  $region34: #{simple_moe_forward.1} parent=0 // pred_check
    _
  $region35: #{simple_moe_forward.1} parent=0 // pred_check_branch
    %394 = sbr.rel (0) target = $region37
  $region36: #{simple_moe_forward.1} parent=0 // pred_region
    _
  $region37: #{simple_moe_forward.1} parent=0 // pred_fallthru
    _

</llo_original>
